<compile_context>
chip_gen: v7x
topology: tpu7x:2x2x1
jax: 0.10.0
libtpu: 0.0.40
codegen_flags: <defaults>
</compile_context>

<pallas_src>
import jax
import jax.numpy as jnp
from jax.experimental import pallas as pl
from jax.experimental.pallas import tpu as pltpu


def _arch_kernel(img_ref, w_ref, b_ref, out_ref, acc_ref):
    # img_ref: (TB, TK)   flattened image chunk for TB batch elements
    # w_ref  : (TK, D)    chunk of the expanded (pool-folded) projection weight
    # b_ref  : (1,  D)    bias
    # out_ref: (TB, D)
    # acc_ref: (TB, D)    f32 accumulator (VMEM scratch)
    k = pl.program_id(1)

    @pl.when(k == 0)
    def _():
        acc_ref[...] = jnp.zeros_like(acc_ref)

    acc_ref[...] += jnp.dot(img_ref[...], w_ref[...],
                            preferred_element_type=jnp.float32)

    @pl.when(k == pl.num_programs(1) - 1)
    def _():
        # backbone = nn.Identity() (no-op); bias added once per image.
        out_ref[...] = (acc_ref[...] + b_ref[...]).astype(out_ref.dtype)


def architecture_forward(images, w, b, patch_size, *, block_b=None, block_k=None):
    """images: (B, C, H, W) float32; w: (P*P*C, D); b: (D,). Returns (B, D)."""
    B, C, H, Wd = images.shape
    P = patch_size
    assert H % P == 0 and Wd % P == 0
    nh, nw = H // P, Wd // P
    Pdim = P * P * C
    D = w.shape[1]
    assert w.shape[0] == Pdim
    CHW = C * H * Wd

    if block_b is None:
        block_b = B
    if block_k is None:
        block_k = CHW
    assert B % block_b == 0
    assert CHW % block_k == 0

    # Zero-copy view of the image bytes: (B, C*H*W).
    img_flat = images.reshape(B, CHW)

    # Expanded projection weight with the (h, w) mean-pool folded in:
    #   Wexp[c*H*W + y*W + x, d] = W[(y%P)*P*C + (x%P)*C + c, d] / (nh*nw)
    w4 = w.reshape(P, P, C, D)                              # (p1, p2, c, d)
    wexp = jnp.tile(w4, (nh, nw, 1, 1))                     # (H, W, C, D)
    wexp = jnp.transpose(wexp, (2, 0, 1, 3)).reshape(CHW, D)
    wexp = (wexp * (1.0 / (nh * nw))).astype(jnp.float32)
    bias2d = b.reshape(1, D).astype(jnp.float32)

    flops = 2 * B * CHW * D
    bytes_accessed = 4 * (B * CHW                      # image, read once
                          + (B // block_b) * CHW * D   # expanded weight per batch block
                          + D + B * D)
    cost = pl.CostEstimate(flops=flops, transcendentals=0,
                           bytes_accessed=bytes_accessed)

    grid_spec = pltpu.PrefetchScalarGridSpec(
        num_scalar_prefetch=0,
        grid=(B // block_b, CHW // block_k),
        in_specs=[
            pl.BlockSpec((block_b, block_k), lambda i, k: (i, k)),   # image chunk
            pl.BlockSpec((block_k, D), lambda i, k: (k, 0)),         # weight chunk
            pl.BlockSpec((1, D), lambda i, k: (0, 0)),               # bias (resident)
        ],
        out_specs=pl.BlockSpec((block_b, D), lambda i, k: (i, 0)),
        scratch_shapes=[pltpu.VMEM((block_b, D), jnp.float32)],
    )

    return pl.pallas_call(
        _arch_kernel,
        out_shape=jax.ShapeDtypeStruct((B, D), jnp.float32),
        grid_spec=grid_spec,
        compiler_params=pltpu.CompilerParams(
            dimension_semantics=("parallel", "arbitrary")),
        cost_estimate=cost,
    )(img_flat, wexp, bias2d)


if __name__ == "__main__":
    # Small shapes consistent with the forward pass.
    B, C, H, Wd = 2, 3, 16, 16
    P = 4                      # patch size
    D = 32                     # embedding dim
    Pdim = P * P * C           # 48

    key = jax.random.PRNGKey(0)
    k_img, k_w, k_b = jax.random.split(key, 3)
    images = jax.random.normal(k_img, (B, C, H, Wd), dtype=jnp.float32)
    w = jax.random.normal(k_w, (Pdim, D), dtype=jnp.float32) * 0.02
    b = jax.random.normal(k_b, (D,), dtype=jnp.float32) * 0.02

    # block_k=256 exercises the pipelined K-reduction (C*H*W = 768 -> 3 steps).
    out = architecture_forward(images, w, b, P, block_b=B, block_k=256)
    out = jax.block_until_ready(out)

    # Reference: full patchify -> linear -> mean-pool (original module semantics).
    x = images.reshape(B, C, H // P, P, Wd // P, P)
    x = jnp.transpose(x, (0, 2, 4, 3, 5, 1)).reshape(B, (H // P) * (Wd // P), Pdim)
    ref = jnp.mean(x @ w + b, axis=1)

    assert out.shape == (B, D)
    assert jnp.allclose(out, ref, atol=1e-4, rtol=1e-4)

    print("KERNEL_OK")
</pallas_src>

<mosaic_0001>
module attributes {stable_mosaic.version = 11 : i64} {
  func.func @_arch_kernel(%arg0: i32, %arg1: i32, %arg2: memref<2x256xf32, #tpu.memory_space<vmem>>, %arg3: memref<256x32xf32, #tpu.memory_space<vmem>>, %arg4: memref<1x32xf32, #tpu.memory_space<vmem>>, %arg5: memref<2x32xf32, #tpu.memory_space<vmem>>, %arg6: memref<2x32xf32, #tpu.memory_space<vmem>>) attributes {dimension_semantics = [#tpu.dimension_semantics<parallel>, #tpu.dimension_semantics<arbitrary>], iteration_bounds = array<i64: 1, 3>, scalar_prefetch = 0 : i64, scratch_operands = 1 : i64, tpu.core_type = #tpu.core_type<tc>, window_params = [{transform_indices = @transform_0, window_bounds = array<i64: 2, 256>}, {transform_indices = @transform_1, window_bounds = array<i64: 256, 32>}, {pipeline_mode = #tpu.pipeline_mode<synchronous>, transform_indices = @transform_2, window_bounds = array<i64: 1, 32>}, {transform_indices = @transform_3, window_bounds = array<i64: 2, 32>}]} {
    %c0_i32 = arith.constant 0 : i32
    %0 = arith.cmpi eq, %arg1, %c0_i32 : i32
    %1 = arith.extui %0 : i1 to i32
    %c0_i32_0 = arith.constant 0 : i32
    %2 = arith.cmpi ne, %1, %c0_i32_0 : i32
    scf.if %2 {
      %cst_9 = arith.constant 0.000000e+00 : f32
      %12 = vector.broadcast %cst_9 : f32 to vector<2x32xf32>
      %c0_10 = arith.constant 0 : index
      %c0_11 = arith.constant 0 : index
      %13 = vector.load %arg6[%c0_10, %c0_11] : memref<2x32xf32, #tpu.memory_space<vmem>>, vector<2x32xf32>
      tpu.vector_store %arg6[%c0_10, %c0_11], %12 {strides = array<i32>} : memref<2x32xf32, #tpu.memory_space<vmem>>, vector<2x32xf32>,
    } else {
    }
    %c0 = arith.constant 0 : index
    %c0_1 = arith.constant 0 : index
    %3 = vector.load %arg6[%c0, %c0_1] : memref<2x32xf32, #tpu.memory_space<vmem>>, vector<2x32xf32>
    %c0_2 = arith.constant 0 : index
    %c0_3 = arith.constant 0 : index
    %4 = vector.load %arg2[%c0_2, %c0_3] : memref<2x256xf32, #tpu.memory_space<vmem>>, vector<2x256xf32>
    %c0_4 = arith.constant 0 : index
    %c0_5 = arith.constant 0 : index
    %5 = vector.load %arg3[%c0_4, %c0_5] : memref<256x32xf32, #tpu.memory_space<vmem>>, vector<256x32xf32>
    %cst = arith.constant dense<0.000000e+00> : vector<2x32xf32>
    %6 = tpu.matmul %4, %5, %cst {dimension_numbers = #tpu.dot_dimension_numbers<[1], [0], [0], [1], [0, 0, 1, 1], [], []>} : vector<2x256xf32>, vector<256x32xf32>, vector<2x32xf32> -> vector<2x32xf32>
    %7 = arith.addf %3, %6 : vector<2x32xf32>
    %c0_6 = arith.constant 0 : index
    %c0_7 = arith.constant 0 : index
    %8 = vector.load %arg6[%c0_6, %c0_7] : memref<2x32xf32, #tpu.memory_space<vmem>>, vector<2x32xf32>
    tpu.vector_store %arg6[%c0_6, %c0_7], %7 {strides = array<i32>} : memref<2x32xf32, #tpu.memory_space<vmem>>, vector<2x32xf32>,
    %c2_i32 = arith.constant 2 : i32
    %9 = arith.cmpi eq, %arg1, %c2_i32 : i32
    %10 = arith.extui %9 : i1 to i32
    %c0_i32_8 = arith.constant 0 : i32
    %11 = arith.cmpi ne, %10, %c0_i32_8 : i32
    scf.if %11 {
      %c0_9 = arith.constant 0 : index
      %c0_10 = arith.constant 0 : index
      %12 = vector.load %arg6[%c0_9, %c0_10] : memref<2x32xf32, #tpu.memory_space<vmem>>, vector<2x32xf32>
      %c0_11 = arith.constant 0 : index
      %c0_12 = arith.constant 0 : index
      %13 = vector.load %arg4[%c0_11, %c0_12] : memref<1x32xf32, #tpu.memory_space<vmem>>, vector<1x32xf32>
      %14 = vector.broadcast %13 : vector<1x32xf32> to vector<2x32xf32>
      %15 = arith.addf %12, %14 : vector<2x32xf32>
      %c0_13 = arith.constant 0 : index
      %c0_14 = arith.constant 0 : index
      %16 = vector.load %arg5[%c0_13, %c0_14] : memref<2x32xf32, #tpu.memory_space<vmem>>, vector<2x32xf32>
      tpu.vector_store %arg5[%c0_13, %c0_14], %15 {strides = array<i32>} : memref<2x32xf32, #tpu.memory_space<vmem>>, vector<2x32xf32>,
    } else {
    }
    return
  }
  func.func @transform_0(%arg0: i32, %arg1: i32) -> (i32, i32) {
    %c0_i32 = arith.constant 0 : i32
    return %arg0, %arg1 : i32, i32
  }
  func.func @transform_1(%arg0: i32, %arg1: i32) -> (i32, i32) {
    %c0_i32 = arith.constant 0 : i32
    %c0_i32_0 = arith.constant 0 : i32
    return %arg1, %c0_i32 : i32, i32
  }
  func.func @transform_2(%arg0: i32, %arg1: i32) -> (i32, i32) {
    %c0_i32 = arith.constant 0 : i32
    %c0_i32_0 = arith.constant 0 : i32
    %c0_i32_1 = arith.constant 0 : i32
    return %c0_i32, %c0_i32_0 : i32, i32
  }
  func.func @transform_3(%arg0: i32, %arg1: i32) -> (i32, i32) {
    %c0_i32 = arith.constant 0 : i32
    %c0_i32_0 = arith.constant 0 : i32
    return %arg0, %c0_i32 : i32, i32
  }
}

</mosaic_0001>

<llo_original>
// kernel: tpu_custom_call.1
$region0: #{tpu_custom_call.1}
  #allocation0 [shape = 'u32[]', space=smem, size = 0x4, offset = 0x4, fixed_abs, tag = 'smem constant byte address 0x4 - core index']
  #allocation1 [shape = 'u32[144,128]{1,0:T(1,128)}', space=vmem, size = 0x12000, scoped, tag = 'internal scratch']
  #allocation2 [shape = 'f32[2,32]{1,0:T(2,128)}', space=vmem, size = 0x400, scoped, tag = 'scratch operand']
  %s0 = inlined_call_operand.vmem [shape: f32[2,768], index: 0, kind: input, shape index: {}]
  %s1 = inlined_call_operand.vmem [shape: f32[768,32], index: 1, kind: input, shape index: {}]
  %s2 = inlined_call_operand.vmem [shape: f32[1,32], index: 2, kind: input, shape index: {}]
  %s3 = inlined_call_operand.hbm [shape: f32[2,32], index: 3, kind: output, shape index: {}]
  %s4 = sld [smem:[#allocation0]]
  $region53: #{tpu_custom_call.1} parent=0
    _
  %s6 = ssub.s32 1, %s4
  %s7 = scalar_select 0, %s6, %s4
  $region1: #{tpu_custom_call.1} parent=0
    #allocation3 [shape = 'u8[1024]{0}', space=vmem, size = 0x400, scoped, tag = 'output window, operand 0, single buffered']
    #allocation4 [shape = 's32[2]{0}', space=sflag, size = 0x8, scoped, tag = 'scoped memory for tpu_custom_call.1']
    %8 = vsyncpa [#allocation4], 0
    loop: start=0, step=1, limit=5
    $region2: #{tpu_custom_call.1} parent=1 // loop_pre_header
      _
    $region3: #{tpu_custom_call.1} parent=1 // loop_header
      %s10 = sphi 0, %s14
      %p11 = scmp.ge.s32.totalorder %s10, 5
      %s17 = sphi 0, %s29
      %s18 = sphi 0, %s25
      %s19 = sphi 0, %s17
      %s20 = sphi 0, %s18
      %s21 = sphi 0, %s19
      %s22 = sphi 0, %s20
      %s34 = sphi 0, %s36
      %s37 = sphi 0, %s34
      %s38 = sphi 0, %s37
      %s54 = sphi 0, %s38
      %s60 = sphi 0, %s62
      %s63 = sphi 0, %s60
      %s64 = sphi 0, %s63
      %s80 = sphi 0, %s64
      %s84 = sphi 0, %s84
      %s86 = sphi 0, %s84
      %s87 = sphi 0, %s86
      %s101 = sphi 0, %s87
      %s107 = sphi 0, %s109
      %s110 = sphi 0, %s107
      %s111 = sphi 0, %s110
      %s127 = sphi 0, %s111
    $region4: #{tpu_custom_call.1} parent=1 // loop_header_branch
      %13 = sbr.rel (%p11) target = $region8
    $region5: #{tpu_custom_call.1} parent=1 // loop_body
      %s15 = ssub.s32 %s10, 1
      %s16 = ssub.s32 %s10, 2
      %s23 = sadd.s32 1, %s18
      %p24 = scmp.ge.s32.totalorder %s23, 3
      %s25 = scalar_select %p24, 0, %s23
      %s26 = sadd.s32 1, %s17
      %s27 = scalar_select %p24, %s26, %s17
      %p28 = scmp.ge.s32.totalorder %s27, 1
      %s29 = scalar_select %p28, 0, %s27
      %s30 = ssub.s32 %s17, %s29
      %s31 = ssub.s32 %s18, %s25
      %s32 = sor.u32 %s30, %s31
      %p33 = scmp.eq.s32.totalorder %s32, 0
      %s35 = sadd.s32 %s34, 1
      %s36 = scalar_select %p33, %s34, %s35
      %p39 = pneg %p33
      %p40 = scmp.eq.s32.totalorder %s10, 2
      %p41 = por %p39, %p40
      %p42 = scmp.ne.s32.totalorder %s34, %s37
      %p43 = scmp.eq.s32.totalorder %s10, 0
      %p44 = por %p42, %p43
      %p45 = scmp.ne.s32.totalorder %s34, %s37
      %p46 = scmp.eq.s32.totalorder %s15, 2
      %p47 = por %p45, %p46
      %p48 = scmp.ne.s32.totalorder %s37, %s38
      %p49 = scmp.eq.s32.totalorder %s15, 0
      %p50 = por %p48, %p49
      %p51 = scmp.ne.s32.totalorder %s37, %s38
      %p52 = scmp.eq.s32.totalorder %s16, 2
      %p53 = por %p51, %p52
      %p55 = scmp.ne.s32.totalorder %s38, %s54
      %p56 = scmp.eq.s32.totalorder %s16, 0
      %p57 = por %p55, %p56
      %s58 = ssub.s32 %s18, %s25
      %p59 = scmp.eq.s32.totalorder %s58, 0
      %s61 = sadd.s32 %s60, 1
      %s62 = scalar_select %p59, %s60, %s61
      %p65 = pneg %p59
      %p66 = scmp.eq.s32.totalorder %s10, 2
      %p67 = por %p65, %p66
      %p68 = scmp.ne.s32.totalorder %s60, %s63
      %p69 = scmp.eq.s32.totalorder %s10, 0
      %p70 = por %p68, %p69
      %p71 = scmp.ne.s32.totalorder %s60, %s63
      %p72 = scmp.eq.s32.totalorder %s15, 2
      %p73 = por %p71, %p72
      %p74 = scmp.ne.s32.totalorder %s63, %s64
      %p75 = scmp.eq.s32.totalorder %s15, 0
      %p76 = por %p74, %p75
      %p77 = scmp.ne.s32.totalorder %s63, %s64
      %p78 = scmp.eq.s32.totalorder %s16, 2
      %p79 = por %p77, %p78
      %p81 = scmp.ne.s32.totalorder %s64, %s80
      %p82 = scmp.eq.s32.totalorder %s16, 0
      %p83 = por %p81, %p82
      %s85 = sadd.s32 %s84, 1
      %p88 = scmp.eq.s32.totalorder %s10, 2
      %p89 = scmp.ne.s32.totalorder %s84, %s86
      %p90 = scmp.eq.s32.totalorder %s10, 0
      %p91 = por %p89, %p90
      %p92 = scmp.ne.s32.totalorder %s84, %s86
      %p93 = scmp.eq.s32.totalorder %s15, 2
      %p94 = por %p92, %p93
      %p95 = scmp.ne.s32.totalorder %s86, %s87
      %p96 = scmp.eq.s32.totalorder %s15, 0
      %p97 = por %p95, %p96
      %p98 = scmp.ne.s32.totalorder %s86, %s87
      %p99 = scmp.eq.s32.totalorder %s16, 2
      %p100 = por %p98, %p99
      %p102 = scmp.ne.s32.totalorder %s87, %s101
      %p103 = scmp.eq.s32.totalorder %s16, 0
      %p104 = por %p102, %p103
      %s105 = ssub.s32 %s17, %s29
      %p106 = scmp.eq.s32.totalorder %s105, 0
      %s108 = sadd.s32 %s107, 1
      %s109 = scalar_select %p106, %s107, %s108
      %p112 = pneg %p106
      %p113 = scmp.eq.s32.totalorder %s10, 2
      %p114 = por %p112, %p113
      %p115 = scmp.ne.s32.totalorder %s107, %s110
      %p116 = scmp.eq.s32.totalorder %s10, 0
      %p117 = por %p115, %p116
      %p118 = scmp.ne.s32.totalorder %s107, %s110
      %p119 = scmp.eq.s32.totalorder %s15, 2
      %p120 = por %p118, %p119
      %p121 = scmp.ne.s32.totalorder %s110, %s111
      %p122 = scmp.eq.s32.totalorder %s15, 0
      %p123 = por %p121, %p122
      %p124 = scmp.ne.s32.totalorder %s110, %s111
      %p125 = scmp.eq.s32.totalorder %s16, 2
      %p126 = por %p124, %p125
      %p128 = scmp.ne.s32.totalorder %s111, %s127
      %p129 = scmp.eq.s32.totalorder %s16, 0
      %p130 = por %p128, %p129
      %p131 = scmp.le.s32.totalorder 1, %s10
      %p132 = scmp.lt.s32.totalorder %s10, 4
      %p133 = pnand %p131, %p132
      %p134 = pneg %p133
      // Predicated region
      $region9: #{tpu_custom_call.1} parent=5 // pred_check
        _
      $region10: #{tpu_custom_call.1} parent=5 // pred_check_branch
        %136 = sbr.rel (%p133) target = $region12
      $region11: #{tpu_custom_call.1} parent=5 // pred_region
        %s137 = ssub.s32 %s10, 1
        // Predicated region
        $region13: #{tpu_custom_call.1} parent=11 // pred_check
          %p138 = pneg %p97
        $region14: #{tpu_custom_call.1} parent=11 // pred_check_branch
          %140 = sbr.rel (%p138) target = $region16
        $region15: #{tpu_custom_call.1} parent=11 // pred_region
          _
        $region16: #{tpu_custom_call.1} parent=11 // pred_fallthru
          _
      $region12: #{tpu_custom_call.1} parent=5 // pred_fallthru
        _
      %p141 = scmp.lt.s32.totalorder %s10, 3
      // Predicated region
      $region17: #{tpu_custom_call.1} parent=5 // pred_check
        %p142 = pneg %p141
      $region18: #{tpu_custom_call.1} parent=5 // pred_check_branch
        %144 = sbr.rel (%p142) target = $region20
      $region19: #{tpu_custom_call.1} parent=5 // pred_region
        // Predicated region
        $region21: #{tpu_custom_call.1} parent=19 // pred_check
          %p145 = pneg %p44
        $region22: #{tpu_custom_call.1} parent=19 // pred_check_branch
          %147 = sbr.rel (%p145) target = $region24
        $region23: #{tpu_custom_call.1} parent=19 // pred_region
          %s148 = smul.u32 2, %s18
          %p149 = scmp.lt.s32.totalorder %s17, 0
          %s150 = scalar_select %p149, %s17, 0
          %p151 = scmp.lt.s32.totalorder %s148, 5
          %s152 = scalar_select %p151, %s148, 5
          %s153 = smul.addr %s150, 6
          %s154 = sadd.s32 %s152, %s153
          %s155 = smul.addr %s154, 2
          %s156 = scalar_lea.vmem %s0, %s155
          %s157 = smul.u32 2, %s18
        $region24: #{tpu_custom_call.1} parent=19 // pred_fallthru
          _
        // Predicated region
        $region25: #{tpu_custom_call.1} parent=19 // pred_check
          %p158 = pneg %p70
        $region26: #{tpu_custom_call.1} parent=19 // pred_check_branch
          %160 = sbr.rel (%p158) target = $region28
        $region27: #{tpu_custom_call.1} parent=19 // pred_region
          %s161 = smul.u32 32, %s18
          %p162 = scmp.lt.s32.totalorder %s161, 95
          %s163 = scalar_select %p162, %s161, 95
          %s164 = smul.addr %s163, 8
          %s165 = scalar_lea.vmem %s1, %s164
          %s166 = smul.u32 32, %s18
        $region28: #{tpu_custom_call.1} parent=19 // pred_fallthru
          _
      $region20: #{tpu_custom_call.1} parent=5 // pred_fallthru
        _
      %p167 = scmp.le.s32.totalorder 1, %s10
      %p168 = scmp.lt.s32.totalorder %s10, 4
      %p169 = pnand %p167, %p168
      %p170 = pneg %p169
      // Predicated region
      $region29: #{tpu_custom_call.1} parent=5 // pred_check
        _
      $region30: #{tpu_custom_call.1} parent=5 // pred_check_branch
        %172 = sbr.rel (%p169) target = $region32
      $region31: #{tpu_custom_call.1} parent=5 // pred_region
        %s173 = ssub.s32 %s10, 1
        %s174 = smul.u32 2, %s20
        %p175 = scmp.lt.s32.totalorder %s19, 0
        %s176 = scalar_select %p175, %s19, 0
        %p177 = scmp.lt.s32.totalorder %s174, 5
        %s178 = scalar_select %p177, %s174, 5
        %s179 = smul.addr %s176, 6
        %s180 = sadd.s32 %s178, %s179
        %s181 = smul.addr %s180, 2
        %s182 = scalar_lea.vmem %s0, %s181
        %p183 = pneg %p50
        %p184 = pneg %p47
        %s185 = smul.u32 32, %s20
        %p186 = scmp.lt.s32.totalorder %s185, 95
        %s187 = scalar_select %p186, %s185, 95
        %s188 = smul.addr %s187, 8
        %s189 = scalar_lea.vmem %s1, %s188
        %p190 = pneg %p76
        %p191 = pneg %p73
        %p192 = pneg %p97
        %p193 = pneg %p94
        %p194 = pneg %p123
        %p195 = pneg %p120
        %s196 = smul.u32 2, %s20
        %p197 = scmp.lt.s32.totalorder %s19, 0
        %s198 = scalar_select %p197, %s19, 0
        %p199 = scmp.lt.s32.totalorder %s196, 5
        %s200 = scalar_select %p199, %s196, 5
        %s201 = smul.addr %s198, 6
        %s202 = sadd.s32 %s200, %s201
        %s203 = smul.addr %s202, 2
        %s204 = scalar_lea.vmem %s0, %s203
        %s205 = smul.u32 2, %s20
        %s206 = smul.u32 32, %s20
        %p207 = scmp.lt.s32.totalorder %s206, 95
        %s208 = scalar_select %p207, %s206, 95
        %s209 = smul.addr %s208, 8
        %s210 = scalar_lea.vmem %s1, %s209
        %s211 = smul.u32 32, %s20
        %p212 = scmp.eq.s32.totalorder %s20, 0
        // Predicated region
        $region33: #{tpu_custom_call.1} parent=31 // pred_check
          %p213 = pneg %p212
        $region34: #{tpu_custom_call.1} parent=31 // pred_check_branch
          %215 = sbr.rel (%p213) target = $region36
        $region35: #{tpu_custom_call.1} parent=31 // pred_region
          %vm216 = vcmask 254976
          %217 = vst.msk [vmem:[#allocation2] sm:$0x3] %vm216, 0.0
        $region36: #{tpu_custom_call.1} parent=31 // pred_fallthru
          _
        %v218 = vld [vmem:[#allocation2] sm:$0x3]
        %v219 = vld [vmem:[%s204] sm:$0xf]
        %v220 = vld [vmem:[%s210] sm:$0xff]
        %v221 = vld [vmem:[%s210 + $0x8] sm:$0xff]
        %v222 = vld [vmem:[%s210 + $0x10] sm:$0xff]
        %v223 = vld [vmem:[%s210 + $0x18] sm:$0xff]
        %v224 = vld [vmem:[%s210 + $0x20] sm:$0xff]
        %v225 = vld [vmem:[%s210 + $0x28] sm:$0xff]
        %v226 = vld [vmem:[%s210 + $0x30] sm:$0xff]
        %v227 = vld [vmem:[%s210 + $0x38] sm:$0xff]
        %v228 = vld [vmem:[%s210 + $0x40] sm:$0xff]
        %v229 = vld [vmem:[%s210 + $0x48] sm:$0xff]
        %v230 = vld [vmem:[%s210 + $0x50] sm:$0xff]
        %v231 = vld [vmem:[%s210 + $0x58] sm:$0xff]
        %v232 = vld [vmem:[%s210 + $0x60] sm:$0xff]
        %v233 = vld [vmem:[%s210 + $0x68] sm:$0xff]
        %v234 = vld [vmem:[%s210 + $0x70] sm:$0xff]
        %v235 = vld [vmem:[%s210 + $0x78] sm:$0xff]
        %v236 = vld [vmem:[%s210 + $0x80] sm:$0xff]
        %v237 = vld [vmem:[%s210 + $0x88] sm:$0xff]
        %v238 = vld [vmem:[%s210 + $0x90] sm:$0xff]
        %v239 = vld [vmem:[%s210 + $0x98] sm:$0xff]
        %v240 = vld [vmem:[%s210 + $0xa0] sm:$0xff]
        %v241 = vld [vmem:[%s210 + $0xa8] sm:$0xff]
        %v242 = vld [vmem:[%s210 + $0xb0] sm:$0xff]
        %v243 = vld [vmem:[%s210 + $0xb8] sm:$0xff]
        %v244 = vld [vmem:[%s210 + $0xc0] sm:$0xff]
        %v245 = vld [vmem:[%s210 + $0xc8] sm:$0xff]
        %v246 = vld [vmem:[%s210 + $0xd0] sm:$0xff]
        %v247 = vld [vmem:[%s210 + $0xd8] sm:$0xff]
        %v248 = vld [vmem:[%s210 + $0xe0] sm:$0xff]
        %v249 = vld [vmem:[%s210 + $0xe8] sm:$0xff]
        %v250 = vld [vmem:[%s210 + $0xf0] sm:$0xff]
        %v251 = vld [vmem:[%s210 + $0xf8] sm:$0xff]
        %v254 = vunpack.c.l.s4 1983009808
        %v255 = vunpack.c.0.s8 %v254
        %v256 = vlaneseq
        %v257 = vshrl.u32 %v256, 7
        %v258 = vsub.s32 %v255, %v257
        %v259 = vrot.slane %v219, %v258
        %v260 = vcombine.high %v259, %v259
        %263 = vmatprep.subr.mxu0 0.0
        %264 = vmatpush1.msra.mxu0 %v220
        %265 = vmatprep.subr.mxu0 0.0
        %266 = vmatpush1.msra.mxu0 %v221
        %267 = vmatprep.subr.mxu0 0.0
        %268 = vmatpush1.msra.mxu0 %v222
        %269 = vmatprep.subr.mxu0 0.0
        %270 = vmatpush1.msra.mxu0 %v223
        %271 = vmatprep.subr.mxu0 0.0
        %272 = vmatpush1.msra.mxu0 %v224
        %273 = vmatprep.subr.mxu0 0.0
        %274 = vmatpush1.msra.mxu0 %v225
        %275 = vmatprep.subr.mxu0 0.0
        %276 = vmatpush1.msra.mxu0 %v226
        %277 = vmatprep.subr.mxu0 0.0
        %278 = vmatpush1.msra.mxu0 %v227
        %279 = vmatprep.subr.mxu0 0.0
        %280 = vmatpush1.msra.mxu0 %v228
        %281 = vmatprep.subr.mxu0 0.0
        %282 = vmatpush1.msra.mxu0 %v229
        %283 = vmatprep.subr.mxu0 0.0
        %284 = vmatpush1.msra.mxu0 %v230
        %285 = vmatprep.subr.mxu0 0.0
        %286 = vmatpush1.msra.mxu0 %v231
        %287 = vmatprep.subr.mxu0 0.0
        %288 = vmatpush1.msra.mxu0 %v232
        %289 = vmatprep.subr.mxu0 0.0
        %290 = vmatpush1.msra.mxu0 %v233
        %291 = vmatprep.subr.mxu0 0.0
        %292 = vmatpush1.msra.mxu0 %v234
        %293 = vmatprep.subr.mxu0 0.0
        %294 = vmatpush1.msra.mxu0 %v235
        %295 = vmatprep.subr.mxu0 0.0
        %296 = vmatpush1.msra.mxu0 %v236
        %297 = vmatprep.subr.mxu0 0.0
        %298 = vmatpush1.msra.mxu0 %v237
        %299 = vmatprep.subr.mxu0 0.0
        %300 = vmatpush1.msra.mxu0 %v238
        %301 = vmatprep.subr.mxu0 0.0
        %302 = vmatpush1.msra.mxu0 %v239
        %303 = vmatprep.subr.mxu0 0.0
        %304 = vmatpush1.msra.mxu0 %v240
        %305 = vmatprep.subr.mxu0 0.0
        %306 = vmatpush1.msra.mxu0 %v241
        %307 = vmatprep.subr.mxu0 0.0
        %308 = vmatpush1.msra.mxu0 %v242
        %309 = vmatprep.subr.mxu0 0.0
        %310 = vmatpush1.msra.mxu0 %v243
        %311 = vmatprep.subr.mxu0 0.0
        %312 = vmatpush1.msra.mxu0 %v244
        %313 = vmatprep.subr.mxu0 0.0
        %314 = vmatpush1.msra.mxu0 %v245
        %315 = vmatprep.subr.mxu0 0.0
        %316 = vmatpush1.msra.mxu0 %v246
        %317 = vmatprep.subr.mxu0 0.0
        %318 = vmatpush1.msra.mxu0 %v247
        %319 = vmatprep.subr.mxu0 0.0
        %320 = vmatpush1.msra.mxu0 %v248
        %321 = vmatprep.subr.mxu0 0.0
        %322 = vmatpush1.msra.mxu0 %v249
        %323 = vmatprep.subr.mxu0 0.0
        %324 = vmatpush1.msra.mxu0 %v250
        %325 = vmatprep.subr.mxu0 0.0
        %326 = vmatpush1.msra.mxu0 %v251
        %327 = vmatprep.mubr.f32.mxu0 %v260
        %328 = vmatmul.mubr.f32.gmra.mrb[0].mxu0 %v259
        %v329 = vpop.f32.mrb[0].mxu0
        %v330 = vadd.f32 0.0, %v329
        %v331 = vpop.f32.mrb[0].mxu0
        %332 = vdwg.mxu0
        %v333 = vadd.f32 %v218, %v330
        %vm334 = vcmask 254976
        %335 = vst.msk [vmem:[#allocation2] sm:$0x3] %vm334, %v333
        %p336 = scmp.eq.s32.totalorder %s20, 2
        // Predicated region
        $region37: #{tpu_custom_call.1} parent=31 // pred_check
          %p337 = pneg %p336
        $region38: #{tpu_custom_call.1} parent=31 // pred_check_branch
          %339 = sbr.rel (%p337) target = $region40
        $region39: #{tpu_custom_call.1} parent=31 // pred_region
          %v340 = vld [vmem:[#allocation2] sm:$0x3]
          %v341 = vld [vmem:[%s2] sm:$0x1]
          %v343 = vlaneseq
          %v344 = vshrl.u32 %v343, 7
          %v345 = vsub.s32 0, %v344
          %v346 = vrot.slane %v341, %v345
          %v348 = vadd.f32 %v340, %v346
          %349 = vst.msk [vmem:[#allocation3] sm:$0x3] %vm334, %v348
        $region40: #{tpu_custom_call.1} parent=31 // pred_fallthru
          _
        // Predicated region
        $region41: #{tpu_custom_call.1} parent=31 // pred_check
          %p350 = pneg %p120
        $region42: #{tpu_custom_call.1} parent=31 // pred_check_branch
          %352 = sbr.rel (%p350) target = $region44
        $region43: #{tpu_custom_call.1} parent=31 // pred_region
          %s354 = ssub.s32 32, 32
          %355 = vsyncadd [#allocation4], %s354
          %s356 = smul.addr %s19, 32
          %s357 = scalar_lea.hbm %s3, %s356
          %s359 = sshll.u32 [#allocation3], 4
          %s360 = int_to_ptr.vmem [resolvable:$true] %s359
          %362 = dma.vmem_to_hbm [thread:$0]  %s360, 32, %s357, [#allocation4]
        $region44: #{tpu_custom_call.1} parent=31 // pred_fallthru
          _
        // Predicated region
        $region45: #{tpu_custom_call.1} parent=31 // pred_check
          %p363 = pneg %p120
        $region46: #{tpu_custom_call.1} parent=31 // pred_check_branch
          %365 = sbr.rel (%p363) target = $region48
        $region47: #{tpu_custom_call.1} parent=31 // pred_region
          %366 = dma.done [#allocation4], 32
        $region48: #{tpu_custom_call.1} parent=31 // pred_fallthru
          _
      $region32: #{tpu_custom_call.1} parent=5 // pred_fallthru
        _
      %p367 = scmp.le.s32.totalorder 2, %s10
      // Predicated region
      $region49: #{tpu_custom_call.1} parent=5 // pred_check
        %p368 = pneg %p367
      $region50: #{tpu_custom_call.1} parent=5 // pred_check_branch
        %370 = sbr.rel (%p368) target = $region52
      $region51: #{tpu_custom_call.1} parent=5 // pred_region
        %s371 = ssub.s32 %s10, 2
      $region52: #{tpu_custom_call.1} parent=5 // pred_fallthru
        _
    $region6: #{tpu_custom_call.1} parent=1 // loop_footer
      %s14 = sadd.s32 1, %s10
    $region7: #{tpu_custom_call.1} parent=1 // loop_footer_branch
      %9 = sbr.rel target = $region3
    $region8: #{tpu_custom_call.1} parent=1 // loop_exit
      _
    %372 = vsyncpa [#allocation4], 1
    %s373 = scalar_lea.sflag [#allocation4], 1
    %374 = vsyncpa %s373, 1

</llo_original>
